<compile_context>
chip_gen: v7x
topology: tpu7x:2x2x1
jax: 0.10.0
libtpu: 0.0.40
codegen_flags: <defaults>
</compile_context>

<pallas_src>
import functools

import jax
import jax.numpy as jnp
from jax import lax
from jax.experimental import pallas as pl
from jax.experimental.pallas import tpu as pltpu

_LANES = 128
_SUBLANES = 8


def _circle_loss_kernel(*refs, s_count, tg_rows, rows_total, kpc,
                        binary_labels, label_is_float, has_partial):
    # refs = (pred_0, ..., pred_{S-1}, label, out)
    #   pred_i : (tg_rows, 128) tile of prediction i
    #   label  : (tg_rows, 128) tile of the label (same index map as preds)
    #   out    : (1, S, 4, 8, 128) resident lane-partial accumulators
    #            channels: [clamped-log-likelihood, sum(p*l), sum(p), sum(l)]
    pred_refs = refs[:s_count]
    label_ref = refs[s_count]
    out_ref = refs[s_count + 1]

    @pl.when(pl.program_id(1) == 0)
    def _init():
        out_ref[...] = jnp.zeros_like(out_ref)

    label = label_ref[...]
    if binary_labels:
        pos = (label > 0.5) if label_is_float else (label != 0)
        lbl = None
    else:
        pos = None
        lbl = label.astype(jnp.float32)

    def _accum(s_idx, ch, vals):
        # vals: (tg_rows, 128) -> deferred (8, 128) sublane/lane partials
        if tg_rows % _SUBLANES == 0:
            out_ref[0, s_idx, ch] += vals.reshape(
                tg_rows // _SUBLANES, _SUBLANES, _LANES).sum(axis=0)
        else:  # tiny full-extent block (< 8 rows)
            out_ref[0, s_idx, ch, 0:1, :] += vals.sum(axis=0, keepdims=True)

    def _body(ok):
        masked = ok is not None
        for s_idx in range(s_count):
            p = pred_refs[s_idx][...].astype(jnp.float32)
            if binary_labels:
                # Hard {0,1} labels: one EUP log per element.
                q = jnp.where(pos, p, 1.0 - p)
                if masked:
                    q = jnp.where(ok, q, 1.0)   # log(1) == 0 -> zero contribution
                    p = jnp.where(ok, p, 0.0)
                _accum(s_idx, 0, jnp.maximum(jnp.log(q), -100.0))  # negated later
                _accum(s_idx, 1, jnp.where(pos, p, 0.0))           # p*l via mask
                _accum(s_idx, 2, p)
                if s_idx == 0:
                    ones = jnp.where(pos, 1.0, 0.0)
                    if masked:
                        ones = jnp.where(ok, ones, 0.0)
                    _accum(0, 3, ones)                             # sum(label)
            else:
                # General (soft-label) path, matching torch's -100 log clamp.
                logp = jnp.maximum(jnp.log(p), -100.0)
                log1mp = jnp.maximum(jnp.log(1.0 - p), -100.0)
                bce = lbl * logp + (1.0 - lbl) * log1mp            # negated later
                prod = p * lbl
                if masked:
                    bce = jnp.where(ok, bce, 0.0)
                    prod = jnp.where(ok, prod, 0.0)
                    p = jnp.where(ok, p, 0.0)
                _accum(s_idx, 0, bce)
                _accum(s_idx, 1, prod)
                _accum(s_idx, 2, p)
                if s_idx == 0:
                    lsum = jnp.where(ok, lbl, 0.0) if masked else lbl
                    _accum(0, 3, lsum)

    if has_partial:
        row_start = (pl.program_id(0) * kpc + pl.program_id(1)) * tg_rows
        valid_rows = rows_total - row_start   # <= 0 for clamped duplicate blocks

        @pl.when(valid_rows >= tg_rows)
        def _full():
            _body(None)

        @pl.when(valid_rows < tg_rows)
        def _tail():
            row_ids = lax.broadcasted_iota(jnp.int32, (tg_rows, _LANES), 0)
            _body(row_ids < valid_rows)
    else:
        _body(None)


def circle_loss(predict_list, label, ep=1e-6, assume_binary_labels=False,
                max_tile_rows=None):
    """CircleLoss.forward.

    predict_list: list/tuple of (B, C, H, W) arrays in (0, 1) (post-sigmoid, as
                  nn.BCELoss expects), or a stacked (S, B, C, H, W) array.
    label:        (B, C, H, W) array; treated as label.float().
    assume_binary_labels: enable the faster single-log path for hard {0,1}
                  labels (default False to stay safe for soft labels).
    """
    if not isinstance(predict_list, (list, tuple)):
        predict_list = [predict_list[i] for i in range(predict_list.shape[0])]
    s_count = len(predict_list)
    assert s_count >= 1
    n_true = int(label.size)
    for p in predict_list:
        assert int(p.size) == n_true, "prediction/label element counts differ"

    if label.dtype == jnp.bool_:
        label = label.astype(jnp.uint8)
    label_is_float = bool(jnp.issubdtype(label.dtype, jnp.floating))
    if not assume_binary_labels and not label_is_float:
        label = label.astype(jnp.float32)
        label_is_float = True

    def to_rows(x):
        flat = x.reshape(-1)                      # copy-free reshape
        rem = (-flat.shape[0]) % _LANES
        if rem:                                   # rare fallback (n % 128 != 0)
            flat = jnp.pad(flat, (0, rem))        # zero pad contributes 0 to all sums
        return flat.reshape(-1, _LANES)

    preds = [to_rows(p) for p in predict_list]
    label_rows = to_rows(label)
    rows_total = preds[0].shape[0]

    # --- tile the row axis: big tiles amortize the ~0.35us grid-step cost;
    # sized so 2x-buffered (S+1) input streams stay within ~16 MiB of VMEM. ---
    if max_tile_rows is None:
        in_streams = s_count + 1
        tile_bytes = max(512 * 1024,
                         min(2 * 1024 * 1024, (16 * 1024 * 1024) // (2 * in_streams)))
        tg_rows = max(_SUBLANES,
                      (tile_bytes // (4 * _LANES)) // _SUBLANES * _SUBLANES)
    else:
        tg_rows = max(1, int(max_tile_rows))
    tg_rows = min(tg_rows, rows_total)
    if tg_rows < rows_total:
        # blocks not spanning the full row axis must be sublane-aligned
        tg_rows = max(_SUBLANES, (tg_rows // _SUBLANES) * _SUBLANES)

    num_k = pl.cdiv(rows_total, tg_rows)
    ncores = 2 if num_k >= 2 else 1   # split the reduction across v7x's 2 TCs
    kpc = pl.cdiv(num_k, ncores)
    has_partial = (rows_total % tg_rows != 0) or (ncores * kpc != num_k)

    def in_index(c, k):
        # clamp so the (rare) duplicate step of the second core stays in-bounds;
        # the kernel fully masks it so it contributes exactly zero.
        return (jnp.minimum(c * kpc + k, num_k - 1), 0)

    in_specs = [pl.BlockSpec((tg_rows, _LANES), in_index) for _ in range(s_count)]
    in_specs.append(pl.BlockSpec((tg_rows, _LANES), in_index))   # label

    kernel = functools.partial(
        _circle_loss_kernel,
        s_count=s_count, tg_rows=tg_rows, rows_total=rows_total, kpc=kpc,
        binary_labels=assume_binary_labels, label_is_float=label_is_float,
        has_partial=has_partial)

    partials = pl.pallas_call(
        kernel,
        out_shape=jax.ShapeDtypeStruct(
            (ncores, s_count, 4, _SUBLANES, _LANES), jnp.float32),
        grid_spec=pltpu.PrefetchScalarGridSpec(
            num_scalar_prefetch=0,
            grid=(ncores, kpc),
            in_specs=in_specs,
            out_specs=pl.BlockSpec((1, s_count, 4, _SUBLANES, _LANES),
                                   lambda c, k: (c, 0, 0, 0, 0)),
        ),
        compiler_params=pltpu.CompilerParams(
            dimension_semantics=("parallel", "arbitrary"),
            vmem_limit_bytes=32 * 1024 * 1024,
        ),
    )(*preds, label_rows)

    # Cross-core + cross-lane/sublane reduce and all scalar math in the wrapper.
    sums = jnp.sum(partials, axis=(0, 3, 4))          # (S, 4)
    log_sum = sums[:, 0]
    inter_sum = sums[:, 1]
    p_sum = sums[:, 2]
    l_sum = sums[0, 3]                                 # same for every prediction

    bce_mean = -log_sum / jnp.float32(n_true)          # nn.BCELoss (mean reduction)
    dice = 1.0 - (2.0 * inter_sum + ep) / (p_sum + l_sum + ep)
    weights = (jnp.arange(s_count, dtype=jnp.float32) + 1.0) / jnp.float32(s_count)
    return jnp.sum(weights * (bce_mean + dice))


def _reference_circle_loss(predict, label, ep=1e-6):
    # pure-JAX reference mirroring the PyTorch CircleLoss.forward
    lbl = label.astype(jnp.float32)
    s_count = predict.shape[0]
    loss = jnp.float32(0.0)
    for idx in range(s_count):
        p = predict[idx].astype(jnp.float32)
        logp = jnp.maximum(jnp.log(p), -100.0)
        log1mp = jnp.maximum(jnp.log(1.0 - p), -100.0)
        bce = -jnp.mean(lbl * logp + (1.0 - lbl) * log1mp)
        inter = 2.0 * jnp.sum(p * lbl) + ep
        union = jnp.sum(p) + jnp.sum(lbl) + ep
        dice = 1.0 - inter / union
        w = (1.0 + idx) / s_count
        loss = loss + w * (bce + dice)
    return loss


if __name__ == "__main__":
    key = jax.random.PRNGKey(0)
    k_pred, k_label, k_soft = jax.random.split(key, 3)

    # --- test 1: binary labels, fast single-log path -----------------------
    S, B, C, H, W = 3, 2, 4, 16, 16
    predict = jax.nn.sigmoid(jax.random.normal(k_pred, (S, B, C, H, W), jnp.float32))
    label_bin = (jax.random.uniform(k_label, (B, C, H, W)) > 0.5).astype(jnp.float32)
    predict_list = [predict[i] for i in range(S)]

    loss_bin = jax.block_until_ready(
        circle_loss(predict_list, label_bin, assume_binary_labels=True))
    ref_bin = _reference_circle_loss(predict, label_bin)
    assert jnp.allclose(loss_bin, ref_bin, rtol=1e-5, atol=1e-5), (loss_bin, ref_bin)

    # --- test 2: soft labels, general two-log path --------------------------
    label_soft = jax.random.uniform(k_soft, (B, C, H, W), dtype=jnp.float32)
    loss_soft = jax.block_until_ready(
        circle_loss(predict_list, label_soft, assume_binary_labels=False))
    ref_soft = _reference_circle_loss(predict, label_soft)
    assert jnp.allclose(loss_soft, ref_soft, rtol=1e-5, atol=1e-5), (loss_soft, ref_soft)

    # --- test 3: multi-tile grid, ragged tail mask, 2-way core split --------
    S2, B2, C2, H2, W2 = 2, 2, 4, 16, 20   # rows=20, tile=8 -> 3 blocks, 2 cores
    pred2 = jax.nn.sigmoid(jax.random.normal(k_pred, (S2, B2, C2, H2, W2), jnp.float32))
    lab2 = (jax.random.uniform(k_label, (B2, C2, H2, W2)) > 0.5).astype(jnp.float32)
    loss2 = jax.block_until_ready(
        circle_loss([pred2[i] for i in range(S2)], lab2,
                    assume_binary_labels=True, max_tile_rows=8))
    ref2 = _reference_circle_loss(pred2, lab2)
    assert jnp.allclose(loss2, ref2, rtol=1e-5, atol=1e-5), (loss2, ref2)

    print("KERNEL_OK")
</pallas_src>

<mosaic_0001>
module attributes {stable_mosaic.version = 11 : i64} {
  func.func @_circle_loss_kernel(%arg0: i32, %arg1: i32, %arg2: memref<16x128xf32, #tpu.memory_space<vmem>>, %arg3: memref<16x128xf32, #tpu.memory_space<vmem>>, %arg4: memref<16x128xf32, #tpu.memory_space<vmem>>, %arg5: memref<16x128xf32, #tpu.memory_space<vmem>>, %arg6: memref<1x3x4x8x128xf32, #tpu.memory_space<vmem>>) attributes {dimension_semantics = [#tpu.dimension_semantics<parallel>, #tpu.dimension_semantics<arbitrary>], iteration_bounds = array<i64: 1, 1>, scalar_prefetch = 0 : i64, scratch_operands = 0 : i64, tpu.core_type = #tpu.core_type<tc>, window_params = [{transform_indices = @transform_0, window_bounds = array<i64: 16, 128>}, {transform_indices = @transform_1, window_bounds = array<i64: 16, 128>}, {transform_indices = @transform_2, window_bounds = array<i64: 16, 128>}, {transform_indices = @transform_3, window_bounds = array<i64: 16, 128>}, {transform_indices = @transform_4, window_bounds = array<i64: 1, 3, 4, 8, 128>}]} {
    %c0_i32 = arith.constant 0 : i32
    %0 = arith.cmpi eq, %arg1, %c0_i32 : i32
    %1 = arith.extui %0 : i1 to i32
    %c0_i32_0 = arith.constant 0 : i32
    %2 = arith.cmpi ne, %1, %c0_i32_0 : i32
    scf.if %2 {
      %cst_126 = arith.constant 0.000000e+00 : f32
      %116 = vector.broadcast %cst_126 : f32 to vector<1x3x4x8x128xf32>
      %c0_127 = arith.constant 0 : index
      %c0_128 = arith.constant 0 : index
      %c0_129 = arith.constant 0 : index
      %c0_130 = arith.constant 0 : index
      %c0_131 = arith.constant 0 : index
      %117 = vector.load %arg6[%c0_127, %c0_128, %c0_129, %c0_130, %c0_131] : memref<1x3x4x8x128xf32, #tpu.memory_space<vmem>>, vector<1x3x4x8x128xf32>
      tpu.vector_store %arg6[%c0_127, %c0_128, %c0_129, %c0_130, %c0_131], %116 {strides = array<i32>} : memref<1x3x4x8x128xf32, #tpu.memory_space<vmem>>, vector<1x3x4x8x128xf32>,
    } else {
    }
    %c0 = arith.constant 0 : index
    %c0_1 = arith.constant 0 : index
    %3 = vector.load %arg5[%c0, %c0_1] : memref<16x128xf32, #tpu.memory_space<vmem>>, vector<16x128xf32>
    %cst = arith.constant 5.000000e-01 : f32
    %4 = vector.broadcast %cst : f32 to vector<16x128xf32>
    %5 = arith.cmpf ogt, %3, %4 : vector<16x128xf32>
    %c0_2 = arith.constant 0 : index
    %c0_3 = arith.constant 0 : index
    %6 = vector.load %arg2[%c0_2, %c0_3] : memref<16x128xf32, #tpu.memory_space<vmem>>, vector<16x128xf32>
    %cst_4 = arith.constant 1.000000e+00 : f32
    %7 = vector.broadcast %cst_4 : f32 to vector<16x128xf32>
    %8 = arith.subf %7, %6 : vector<16x128xf32>
    %9 = arith.select %5, %6, %8 : vector<16x128xi1>, vector<16x128xf32>
    %10 = math.log %9 : vector<16x128xf32>
    %cst_5 = arith.constant -1.000000e+02 : f32
    %11 = vector.broadcast %cst_5 : f32 to vector<16x128xf32>
    %12 = arith.maximumf %10, %11 : vector<16x128xf32>
    %c0_6 = arith.constant 0 : index
    %c0_7 = arith.constant 0 : index
    %c0_8 = arith.constant 0 : index
    %c0_9 = arith.constant 0 : index
    %c0_10 = arith.constant 0 : index
    %13 = vector.load %arg6[%c0_6, %c0_7, %c0_8, %c0_9, %c0_10] : memref<1x3x4x8x128xf32, #tpu.memory_space<vmem>>, vector<1x1x1x8x128xf32>
    %14 = vector.shape_cast %13 : vector<1x1x1x8x128xf32> to vector<8x128xf32>
    %15 = vector.shape_cast %12 : vector<16x128xf32> to vector<2x8x128xf32>
    %cst_11 = arith.constant dense<0.000000e+00> : vector<8x128xf32>
    %16 = vector.multi_reduction <add>, %15, %cst_11 [0] : vector<2x8x128xf32> to vector<8x128xf32>
    %17 = arith.addf %14, %16 : vector<8x128xf32>
    %c0_12 = arith.constant 0 : index
    %c0_13 = arith.constant 0 : index
    %c0_14 = arith.constant 0 : index
    %c0_15 = arith.constant 0 : index
    %c0_16 = arith.constant 0 : index
    %18 = vector.load %arg6[%c0_12, %c0_13, %c0_14, %c0_15, %c0_16] : memref<1x3x4x8x128xf32, #tpu.memory_space<vmem>>, vector<1x1x1x8x128xf32>
    %19 = vector.shape_cast %18 : vector<1x1x1x8x128xf32> to vector<8x128xf32>
    %20 = vector.shape_cast %17 : vector<8x128xf32> to vector<1x1x1x8x128xf32>
    tpu.vector_store %arg6[%c0_12, %c0_13, %c0_14, %c0_15, %c0_16], %20 {strides = array<i32>} : memref<1x3x4x8x128xf32, #tpu.memory_space<vmem>>, vector<1x1x1x8x128xf32>,
    %cst_17 = arith.constant 0.000000e+00 : f32
    %21 = vector.broadcast %cst_17 : f32 to vector<16x128xf32>
    %22 = arith.select %5, %6, %21 : vector<16x128xi1>, vector<16x128xf32>
    %c0_18 = arith.constant 0 : index
    %c0_19 = arith.constant 0 : index
    %c1 = arith.constant 1 : index
    %c0_20 = arith.constant 0 : index
    %c0_21 = arith.constant 0 : index
    %23 = vector.load %arg6[%c0_18, %c0_19, %c1, %c0_20, %c0_21] : memref<1x3x4x8x128xf32, #tpu.memory_space<vmem>>, vector<1x1x1x8x128xf32>
    %24 = vector.shape_cast %23 : vector<1x1x1x8x128xf32> to vector<8x128xf32>
    %25 = vector.shape_cast %22 : vector<16x128xf32> to vector<2x8x128xf32>
    %cst_22 = arith.constant dense<0.000000e+00> : vector<8x128xf32>
    %26 = vector.multi_reduction <add>, %25, %cst_22 [0] : vector<2x8x128xf32> to vector<8x128xf32>
    %27 = arith.addf %24, %26 : vector<8x128xf32>
    %c0_23 = arith.constant 0 : index
    %c0_24 = arith.constant 0 : index
    %c1_25 = arith.constant 1 : index
    %c0_26 = arith.constant 0 : index
    %c0_27 = arith.constant 0 : index
    %28 = vector.load %arg6[%c0_23, %c0_24, %c1_25, %c0_26, %c0_27] : memref<1x3x4x8x128xf32, #tpu.memory_space<vmem>>, vector<1x1x1x8x128xf32>
    %29 = vector.shape_cast %28 : vector<1x1x1x8x128xf32> to vector<8x128xf32>
    %30 = vector.shape_cast %27 : vector<8x128xf32> to vector<1x1x1x8x128xf32>
    tpu.vector_store %arg6[%c0_23, %c0_24, %c1_25, %c0_26, %c0_27], %30 {strides = array<i32>} : memref<1x3x4x8x128xf32, #tpu.memory_space<vmem>>, vector<1x1x1x8x128xf32>,
    %c0_28 = arith.constant 0 : index
    %c0_29 = arith.constant 0 : index
    %c2 = arith.constant 2 : index
    %c0_30 = arith.constant 0 : index
    %c0_31 = arith.constant 0 : index
    %31 = vector.load %arg6[%c0_28, %c0_29, %c2, %c0_30, %c0_31] : memref<1x3x4x8x128xf32, #tpu.memory_space<vmem>>, vector<1x1x1x8x128xf32>
    %32 = vector.shape_cast %31 : vector<1x1x1x8x128xf32> to vector<8x128xf32>
    %33 = vector.shape_cast %6 : vector<16x128xf32> to vector<2x8x128xf32>
    %cst_32 = arith.constant dense<0.000000e+00> : vector<8x128xf32>
    %34 = vector.multi_reduction <add>, %33, %cst_32 [0] : vector<2x8x128xf32> to vector<8x128xf32>
    %35 = arith.addf %32, %34 : vector<8x128xf32>
    %c0_33 = arith.constant 0 : index
    %c0_34 = arith.constant 0 : index
    %c2_35 = arith.constant 2 : index
    %c0_36 = arith.constant 0 : index
    %c0_37 = arith.constant 0 : index
    %36 = vector.load %arg6[%c0_33, %c0_34, %c2_35, %c0_36, %c0_37] : memref<1x3x4x8x128xf32, #tpu.memory_space<vmem>>, vector<1x1x1x8x128xf32>
    %37 = vector.shape_cast %36 : vector<1x1x1x8x128xf32> to vector<8x128xf32>
    %38 = vector.shape_cast %35 : vector<8x128xf32> to vector<1x1x1x8x128xf32>
    tpu.vector_store %arg6[%c0_33, %c0_34, %c2_35, %c0_36, %c0_37], %38 {strides = array<i32>} : memref<1x3x4x8x128xf32, #tpu.memory_space<vmem>>, vector<1x1x1x8x128xf32>,
    %cst_38 = arith.constant 1.000000e+00 : f32
    %cst_39 = arith.constant 0.000000e+00 : f32
    %39 = vector.broadcast %cst_38 : f32 to vector<16x128xf32>
    %40 = vector.broadcast %cst_39 : f32 to vector<16x128xf32>
    %41 = arith.select %5, %39, %40 : vector<16x128xi1>, vector<16x128xf32>
    %c0_40 = arith.constant 0 : index
    %c0_41 = arith.constant 0 : index
    %c3 = arith.constant 3 : index
    %c0_42 = arith.constant 0 : index
    %c0_43 = arith.constant 0 : index
    %42 = vector.load %arg6[%c0_40, %c0_41, %c3, %c0_42, %c0_43] : memref<1x3x4x8x128xf32, #tpu.memory_space<vmem>>, vector<1x1x1x8x128xf32>
    %43 = vector.shape_cast %42 : vector<1x1x1x8x128xf32> to vector<8x128xf32>
    %44 = vector.shape_cast %41 : vector<16x128xf32> to vector<2x8x128xf32>
    %cst_44 = arith.constant dense<0.000000e+00> : vector<8x128xf32>
    %45 = vector.multi_reduction <add>, %44, %cst_44 [0] : vector<2x8x128xf32> to vector<8x128xf32>
    %46 = arith.addf %43, %45 : vector<8x128xf32>
    %c0_45 = arith.constant 0 : index
    %c0_46 = arith.constant 0 : index
    %c3_47 = arith.constant 3 : index
    %c0_48 = arith.constant 0 : index
    %c0_49 = arith.constant 0 : index
    %47 = vector.load %arg6[%c0_45, %c0_46, %c3_47, %c0_48, %c0_49] : memref<1x3x4x8x128xf32, #tpu.memory_space<vmem>>, vector<1x1x1x8x128xf32>
    %48 = vector.shape_cast %47 : vector<1x1x1x8x128xf32> to vector<8x128xf32>
    %49 = vector.shape_cast %46 : vector<8x128xf32> to vector<1x1x1x8x128xf32>
    tpu.vector_store %arg6[%c0_45, %c0_46, %c3_47, %c0_48, %c0_49], %49 {strides = array<i32>} : memref<1x3x4x8x128xf32, #tpu.memory_space<vmem>>, vector<1x1x1x8x128xf32>,
    %c0_50 = arith.constant 0 : index
    %c0_51 = arith.constant 0 : index
    %50 = vector.load %arg3[%c0_50, %c0_51] : memref<16x128xf32, #tpu.memory_space<vmem>>, vector<16x128xf32>
    %cst_52 = arith.constant 1.000000e+00 : f32
    %51 = vector.broadcast %cst_52 : f32 to vector<16x128xf32>
    %52 = arith.subf %51, %50 : vector<16x128xf32>
    %53 = arith.select %5, %50, %52 : vector<16x128xi1>, vector<16x128xf32>
    %54 = math.log %53 : vector<16x128xf32>
    %cst_53 = arith.constant -1.000000e+02 : f32
    %55 = vector.broadcast %cst_53 : f32 to vector<16x128xf32>
    %56 = arith.maximumf %54, %55 : vector<16x128xf32>
    %c0_54 = arith.constant 0 : index
    %c1_55 = arith.constant 1 : index
    %c0_56 = arith.constant 0 : index
    %c0_57 = arith.constant 0 : index
    %c0_58 = arith.constant 0 : index
    %57 = vector.load %arg6[%c0_54, %c1_55, %c0_56, %c0_57, %c0_58] : memref<1x3x4x8x128xf32, #tpu.memory_space<vmem>>, vector<1x1x1x8x128xf32>
    %58 = vector.shape_cast %57 : vector<1x1x1x8x128xf32> to vector<8x128xf32>
    %59 = vector.shape_cast %56 : vector<16x128xf32> to vector<2x8x128xf32>
    %cst_59 = arith.constant dense<0.000000e+00> : vector<8x128xf32>
    %60 = vector.multi_reduction <add>, %59, %cst_59 [0] : vector<2x8x128xf32> to vector<8x128xf32>
    %61 = arith.addf %58, %60 : vector<8x128xf32>
    %c0_60 = arith.constant 0 : index
    %c1_61 = arith.constant 1 : index
    %c0_62 = arith.constant 0 : index
    %c0_63 = arith.constant 0 : index
    %c0_64 = arith.constant 0 : index
    %62 = vector.load %arg6[%c0_60, %c1_61, %c0_62, %c0_63, %c0_64] : memref<1x3x4x8x128xf32, #tpu.memory_space<vmem>>, vector<1x1x1x8x128xf32>
    %63 = vector.shape_cast %62 : vector<1x1x1x8x128xf32> to vector<8x128xf32>
    %64 = vector.shape_cast %61 : vector<8x128xf32> to vector<1x1x1x8x128xf32>
    tpu.vector_store %arg6[%c0_60, %c1_61, %c0_62, %c0_63, %c0_64], %64 {strides = array<i32>} : memref<1x3x4x8x128xf32, #tpu.memory_space<vmem>>, vector<1x1x1x8x128xf32>,
    %cst_65 = arith.constant 0.000000e+00 : f32
    %65 = vector.broadcast %cst_65 : f32 to vector<16x128xf32>
    %66 = arith.select %5, %50, %65 : vector<16x128xi1>, vector<16x128xf32>
    %c0_66 = arith.constant 0 : index
    %c1_67 = arith.constant 1 : index
    %c1_68 = arith.constant 1 : index
    %c0_69 = arith.constant 0 : index
    %c0_70 = arith.constant 0 : index
    %67 = vector.load %arg6[%c0_66, %c1_67, %c1_68, %c0_69, %c0_70] : memref<1x3x4x8x128xf32, #tpu.memory_space<vmem>>, vector<1x1x1x8x128xf32>
    %68 = vector.shape_cast %67 : vector<1x1x1x8x128xf32> to vector<8x128xf32>
    %69 = vector.shape_cast %66 : vector<16x128xf32> to vector<2x8x128xf32>
    %cst_71 = arith.constant dense<0.000000e+00> : vector<8x128xf32>
    %70 = vector.multi_reduction <add>, %69, %cst_71 [0] : vector<2x8x128xf32> to vector<8x128xf32>
    %71 = arith.addf %68, %70 : vector<8x128xf32>
    %c0_72 = arith.constant 0 : index
    %c1_73 = arith.constant 1 : index
    %c1_74 = arith.constant 1 : index
    %c0_75 = arith.constant 0 : index
    %c0_76 = arith.constant 0 : index
    %72 = vector.load %arg6[%c0_72, %c1_73, %c1_74, %c0_75, %c0_76] : memref<1x3x4x8x128xf32, #tpu.memory_space<vmem>>, vector<1x1x1x8x128xf32>
    %73 = vector.shape_cast %72 : vector<1x1x1x8x128xf32> to vector<8x128xf32>
    %74 = vector.shape_cast %71 : vector<8x128xf32> to vector<1x1x1x8x128xf32>
    tpu.vector_store %arg6[%c0_72, %c1_73, %c1_74, %c0_75, %c0_76], %74 {strides = array<i32>} : memref<1x3x4x8x128xf32, #tpu.memory_space<vmem>>, vector<1x1x1x8x128xf32>,
    %c0_77 = arith.constant 0 : index
    %c1_78 = arith.constant 1 : index
    %c2_79 = arith.constant 2 : index
    %c0_80 = arith.constant 0 : index
    %c0_81 = arith.constant 0 : index
    %75 = vector.load %arg6[%c0_77, %c1_78, %c2_79, %c0_80, %c0_81] : memref<1x3x4x8x128xf32, #tpu.memory_space<vmem>>, vector<1x1x1x8x128xf32>
    %76 = vector.shape_cast %75 : vector<1x1x1x8x128xf32> to vector<8x128xf32>
    %77 = vector.shape_cast %50 : vector<16x128xf32> to vector<2x8x128xf32>
    %cst_82 = arith.constant dense<0.000000e+00> : vector<8x128xf32>
    %78 = vector.multi_reduction <add>, %77, %cst_82 [0] : vector<2x8x128xf32> to vector<8x128xf32>
    %79 = arith.addf %76, %78 : vector<8x128xf32>
    %c0_83 = arith.constant 0 : index
    %c1_84 = arith.constant 1 : index
    %c2_85 = arith.constant 2 : index
    %c0_86 = arith.constant 0 : index
    %c0_87 = arith.constant 0 : index
    %80 = vector.load %arg6[%c0_83, %c1_84, %c2_85, %c0_86, %c0_87] : memref<1x3x4x8x128xf32, #tpu.memory_space<vmem>>, vector<1x1x1x8x128xf32>
    %81 = vector.shape_cast %80 : vector<1x1x1x8x128xf32> to vector<8x128xf32>
    %82 = vector.shape_cast %79 : vector<8x128xf32> to vector<1x1x1x8x128xf32>
    tpu.vector_store %arg6[%c0_83, %c1_84, %c2_85, %c0_86, %c0_87], %82 {strides = array<i32>} : memref<1x3x4x8x128xf32, #tpu.memory_space<vmem>>, vector<1x1x1x8x128xf32>,
    %c0_88 = arith.constant 0 : index
    %c0_89 = arith.constant 0 : index
    %83 = vector.load %arg4[%c0_88, %c0_89] : memref<16x128xf32, #tpu.memory_space<vmem>>, vector<16x128xf32>
    %cst_90 = arith.constant 1.000000e+00 : f32
    %84 = vector.broadcast %cst_90 : f32 to vector<16x128xf32>
    %85 = arith.subf %84, %83 : vector<16x128xf32>
    %86 = arith.select %5, %83, %85 : vector<16x128xi1>, vector<16x128xf32>
    %87 = math.log %86 : vector<16x128xf32>
    %cst_91 = arith.constant -1.000000e+02 : f32
    %88 = vector.broadcast %cst_91 : f32 to vector<16x128xf32>
    %89 = arith.maximumf %87, %88 : vector<16x128xf32>
    %c0_92 = arith.constant 0 : index
    %c2_93 = arith.constant 2 : index
    %c0_94 = arith.constant 0 : index
    %c0_95 = arith.constant 0 : index
    %c0_96 = arith.constant 0 : index
    %90 = vector.load %arg6[%c0_92, %c2_93, %c0_94, %c0_95, %c0_96] : memref<1x3x4x8x128xf32, #tpu.memory_space<vmem>>, vector<1x1x1x8x128xf32>
    %91 = vector.shape_cast %90 : vector<1x1x1x8x128xf32> to vector<8x128xf32>
    %92 = vector.shape_cast %89 : vector<16x128xf32> to vector<2x8x128xf32>
    %cst_97 = arith.constant dense<0.000000e+00> : vector<8x128xf32>
    %93 = vector.multi_reduction <add>, %92, %cst_97 [0] : vector<2x8x128xf32> to vector<8x128xf32>
    %94 = arith.addf %91, %93 : vector<8x128xf32>
    %c0_98 = arith.constant 0 : index
    %c2_99 = arith.constant 2 : index
    %c0_100 = arith.constant 0 : index
    %c0_101 = arith.constant 0 : index
    %c0_102 = arith.constant 0 : index
    %95 = vector.load %arg6[%c0_98, %c2_99, %c0_100, %c0_101, %c0_102] : memref<1x3x4x8x128xf32, #tpu.memory_space<vmem>>, vector<1x1x1x8x128xf32>
    %96 = vector.shape_cast %95 : vector<1x1x1x8x128xf32> to vector<8x128xf32>
    %97 = vector.shape_cast %94 : vector<8x128xf32> to vector<1x1x1x8x128xf32>
    tpu.vector_store %arg6[%c0_98, %c2_99, %c0_100, %c0_101, %c0_102], %97 {strides = array<i32>} : memref<1x3x4x8x128xf32, #tpu.memory_space<vmem>>, vector<1x1x1x8x128xf32>,
    %cst_103 = arith.constant 0.000000e+00 : f32
    %98 = vector.broadcast %cst_103 : f32 to vector<16x128xf32>
    %99 = arith.select %5, %83, %98 : vector<16x128xi1>, vector<16x128xf32>
    %c0_104 = arith.constant 0 : index
    %c2_105 = arith.constant 2 : index
    %c1_106 = arith.constant 1 : index
    %c0_107 = arith.constant 0 : index
    %c0_108 = arith.constant 0 : index
    %100 = vector.load %arg6[%c0_104, %c2_105, %c1_106, %c0_107, %c0_108] : memref<1x3x4x8x128xf32, #tpu.memory_space<vmem>>, vector<1x1x1x8x128xf32>
    %101 = vector.shape_cast %100 : vector<1x1x1x8x128xf32> to vector<8x128xf32>
    %102 = vector.shape_cast %99 : vector<16x128xf32> to vector<2x8x128xf32>
    %cst_109 = arith.constant dense<0.000000e+00> : vector<8x128xf32>
    %103 = vector.multi_reduction <add>, %102, %cst_109 [0] : vector<2x8x128xf32> to vector<8x128xf32>
    %104 = arith.addf %101, %103 : vector<8x128xf32>
    %c0_110 = arith.constant 0 : index
    %c2_111 = arith.constant 2 : index
    %c1_112 = arith.constant 1 : index
    %c0_113 = arith.constant 0 : index
    %c0_114 = arith.constant 0 : index
    %105 = vector.load %arg6[%c0_110, %c2_111, %c1_112, %c0_113, %c0_114] : memref<1x3x4x8x128xf32, #tpu.memory_space<vmem>>, vector<1x1x1x8x128xf32>
    %106 = vector.shape_cast %105 : vector<1x1x1x8x128xf32> to vector<8x128xf32>
    %107 = vector.shape_cast %104 : vector<8x128xf32> to vector<1x1x1x8x128xf32>
    tpu.vector_store %arg6[%c0_110, %c2_111, %c1_112, %c0_113, %c0_114], %107 {strides = array<i32>} : memref<1x3x4x8x128xf32, #tpu.memory_space<vmem>>, vector<1x1x1x8x128xf32>,
    %c0_115 = arith.constant 0 : index
    %c2_116 = arith.constant 2 : index
    %c2_117 = arith.constant 2 : index
    %c0_118 = arith.constant 0 : index
    %c0_119 = arith.constant 0 : index
    %108 = vector.load %arg6[%c0_115, %c2_116, %c2_117, %c0_118, %c0_119] : memref<1x3x4x8x128xf32, #tpu.memory_space<vmem>>, vector<1x1x1x8x128xf32>
    %109 = vector.shape_cast %108 : vector<1x1x1x8x128xf32> to vector<8x128xf32>
    %110 = vector.shape_cast %83 : vector<16x128xf32> to vector<2x8x128xf32>
    %cst_120 = arith.constant dense<0.000000e+00> : vector<8x128xf32>
    %111 = vector.multi_reduction <add>, %110, %cst_120 [0] : vector<2x8x128xf32> to vector<8x128xf32>
    %112 = arith.addf %109, %111 : vector<8x128xf32>
    %c0_121 = arith.constant 0 : index
    %c2_122 = arith.constant 2 : index
    %c2_123 = arith.constant 2 : index
    %c0_124 = arith.constant 0 : index
    %c0_125 = arith.constant 0 : index
    %113 = vector.load %arg6[%c0_121, %c2_122, %c2_123, %c0_124, %c0_125] : memref<1x3x4x8x128xf32, #tpu.memory_space<vmem>>, vector<1x1x1x8x128xf32>
    %114 = vector.shape_cast %113 : vector<1x1x1x8x128xf32> to vector<8x128xf32>
    %115 = vector.shape_cast %112 : vector<8x128xf32> to vector<1x1x1x8x128xf32>
    tpu.vector_store %arg6[%c0_121, %c2_122, %c2_123, %c0_124, %c0_125], %115 {strides = array<i32>} : memref<1x3x4x8x128xf32, #tpu.memory_space<vmem>>, vector<1x1x1x8x128xf32>,
    return
  }
  func.func @transform_0(%arg0: i32, %arg1: i32) -> (i32, i32) {
    %c1_i32 = arith.constant 1 : i32
    %0 = arith.muli %arg0, %c1_i32 : i32
    %1 = arith.addi %0, %arg1 : i32
    %c0_i32 = arith.constant 0 : i32
    %2 = arith.minsi %1, %c0_i32 : i32
    %c0_i32_0 = arith.constant 0 : i32
    %c0_i32_1 = arith.constant 0 : i32
    return %2, %c0_i32_0 : i32, i32
  }
  func.func @transform_1(%arg0: i32, %arg1: i32) -> (i32, i32) {
    %c1_i32 = arith.constant 1 : i32
    %0 = arith.muli %arg0, %c1_i32 : i32
    %1 = arith.addi %0, %arg1 : i32
    %c0_i32 = arith.constant 0 : i32
    %2 = arith.minsi %1, %c0_i32 : i32
    %c0_i32_0 = arith.constant 0 : i32
    %c0_i32_1 = arith.constant 0 : i32
    return %2, %c0_i32_0 : i32, i32
  }
  func.func @transform_2(%arg0: i32, %arg1: i32) -> (i32, i32) {
    %c1_i32 = arith.constant 1 : i32
    %0 = arith.muli %arg0, %c1_i32 : i32
    %1 = arith.addi %0, %arg1 : i32
    %c0_i32 = arith.constant 0 : i32
    %2 = arith.minsi %1, %c0_i32 : i32
    %c0_i32_0 = arith.constant 0 : i32
    %c0_i32_1 = arith.constant 0 : i32
    return %2, %c0_i32_0 : i32, i32
  }
  func.func @transform_3(%arg0: i32, %arg1: i32) -> (i32, i32) {
    %c1_i32 = arith.constant 1 : i32
    %0 = arith.muli %arg0, %c1_i32 : i32
    %1 = arith.addi %0, %arg1 : i32
    %c0_i32 = arith.constant 0 : i32
    %2 = arith.minsi %1, %c0_i32 : i32
    %c0_i32_0 = arith.constant 0 : i32
    %c0_i32_1 = arith.constant 0 : i32
    return %2, %c0_i32_0 : i32, i32
  }
  func.func @transform_4(%arg0: i32, %arg1: i32) -> (i32, i32, i32, i32, i32) {
    %c0_i32 = arith.constant 0 : i32
    %c0_i32_0 = arith.constant 0 : i32
    %c0_i32_1 = arith.constant 0 : i32
    %c0_i32_2 = arith.constant 0 : i32
    %c0_i32_3 = arith.constant 0 : i32
    return %arg0, %c0_i32, %c0_i32_0, %c0_i32_1, %c0_i32_2 : i32, i32, i32, i32, i32
  }
}

</mosaic_0001>

<llo_original>
// kernel: tpu_custom_call.1
$region0: #{tpu_custom_call.1}
  #allocation0 [shape = 'u32[]', space=smem, size = 0x4, offset = 0x4, fixed_abs, tag = 'smem constant byte address 0x4 - core index']
  #allocation1 [shape = 'u32[144,128]{1,0:T(1,128)}', space=vmem, size = 0x12000, scoped, tag = 'internal scratch']
  %s0 = inlined_call_operand.hbm [shape: f32[16,128], index: 0, kind: input, shape index: {}]
  %s1 = inlined_call_operand.hbm [shape: f32[16,128], index: 1, kind: input, shape index: {}]
  %s2 = inlined_call_operand.hbm [shape: f32[16,128], index: 2, kind: input, shape index: {}]
  %s3 = inlined_call_operand.hbm [shape: f32[16,128], index: 3, kind: input, shape index: {}]
  %s4 = inlined_call_operand.hbm [shape: f32[1,3,4,8,128], index: 4, kind: output, shape index: {}]
  %s5 = sld [smem:[#allocation0]]
  $region46: #{tpu_custom_call.1} parent=0
    _
  %s7 = ssub.s32 1, %s5
  %s8 = scalar_select 0, %s7, %s5
  $region1: #{tpu_custom_call.1} parent=0
    #allocation2 [shape = 'u8[8192]{0}', space=vmem, size = 0x2000, scoped, tag = 'input window, operand 0, single buffered']
    #allocation3 [shape = 's32[1]{0}', space=sflag, size = 0x4, scoped, tag = 'scoped memory for tpu_custom_call.1']
    #allocation4 [shape = 's32[1]{0}', space=sflag, size = 0x4, scoped, tag = 'scoped memory for tpu_custom_call.1']
    #allocation5 [shape = 'u8[8192]{0}', space=vmem, size = 0x2000, scoped, tag = 'input window, operand 1, single buffered']
    #allocation6 [shape = 's32[1]{0}', space=sflag, size = 0x4, scoped, tag = 'scoped memory for tpu_custom_call.1']
    #allocation7 [shape = 'u8[8192]{0}', space=vmem, size = 0x2000, scoped, tag = 'input window, operand 2, single buffered']
    #allocation8 [shape = 'u8[8192]{0}', space=vmem, size = 0x2000, scoped, tag = 'input window, operand 3, single buffered']
    #allocation9 [shape = 's32[1]{0}', space=sflag, size = 0x4, scoped, tag = 'scoped memory for tpu_custom_call.1']
    #allocation10 [shape = 'u8[49152]{0}', space=vmem, size = 0xc000, scoped, tag = 'output window, operand 0, single buffered']
    %9 = vsyncpa [#allocation3], 0
    %10 = vsyncpa [#allocation6], 0
    %11 = vsyncpa [#allocation9], 0
    %12 = vsyncpa [#allocation4], 0
    // Predicated region
    $region2: #{tpu_custom_call.1} parent=1 // pred_check
      _
    $region3: #{tpu_custom_call.1} parent=1 // pred_check_branch
      %14 = sbr.rel (0) target = $region5
    $region4: #{tpu_custom_call.1} parent=1 // pred_region
      %s15 = sadd.s32 0, 0
      %p16 = scmp.lt.s32.totalorder %s15, 0
      %s17 = scalar_select %p16, %s15, 0
      %s18 = smul.u32 2, %s17
      %s20 = ssub.s32 256, 256
      %21 = vsyncadd [#allocation3], %s20
      %s22 = smul.addr %s18, 128
      %s23 = scalar_lea.hbm %s0, %s22
      %s24 = sshll.u32 [#allocation2], 4
      %s25 = int_to_ptr.vmem [resolvable:$true] %s24
      %30 = dma.hbm_to_vmem [thread:$0]  %s23, 256, %s25, [#allocation3], 128, 128, 8
    $region5: #{tpu_custom_call.1} parent=1 // pred_fallthru
      _
    // Predicated region
    $region6: #{tpu_custom_call.1} parent=1 // pred_check
      _
    $region7: #{tpu_custom_call.1} parent=1 // pred_check_branch
      %32 = sbr.rel (0) target = $region9
    $region8: #{tpu_custom_call.1} parent=1 // pred_region
      %s33 = sadd.s32 0, 0
      %p34 = scmp.lt.s32.totalorder %s33, 0
      %s35 = scalar_select %p34, %s33, 0
      %s36 = smul.u32 2, %s35
      %s38 = ssub.s32 256, 256
      %39 = vsyncadd [#allocation6], %s38
      %s40 = smul.addr %s36, 128
      %s41 = scalar_lea.hbm %s1, %s40
      %s42 = sshll.u32 [#allocation5], 4
      %s43 = int_to_ptr.vmem [resolvable:$true] %s42
      %48 = dma.hbm_to_vmem [thread:$0]  %s41, 256, %s43, [#allocation6], 128, 128, 8
    $region9: #{tpu_custom_call.1} parent=1 // pred_fallthru
      _
    // Predicated region
    $region10: #{tpu_custom_call.1} parent=1 // pred_check
      _
    $region11: #{tpu_custom_call.1} parent=1 // pred_check_branch
      %50 = sbr.rel (0) target = $region13
    $region12: #{tpu_custom_call.1} parent=1 // pred_region
      %s51 = sadd.s32 0, 0
      %p52 = scmp.lt.s32.totalorder %s51, 0
      %s53 = scalar_select %p52, %s51, 0
      %s54 = smul.u32 2, %s53
      %s56 = ssub.s32 256, 256
      %57 = vsyncadd [#allocation6], %s56
      %s58 = smul.addr %s54, 128
      %s59 = scalar_lea.hbm %s2, %s58
      %s60 = sshll.u32 [#allocation7], 4
      %s61 = int_to_ptr.vmem [resolvable:$true] %s60
      %66 = dma.hbm_to_vmem [thread:$0]  %s59, 256, %s61, [#allocation6], 128, 128, 8
    $region13: #{tpu_custom_call.1} parent=1 // pred_fallthru
      _
    // Predicated region
    $region14: #{tpu_custom_call.1} parent=1 // pred_check
      _
    $region15: #{tpu_custom_call.1} parent=1 // pred_check_branch
      %68 = sbr.rel (0) target = $region17
    $region16: #{tpu_custom_call.1} parent=1 // pred_region
      %s69 = sadd.s32 0, 0
      %p70 = scmp.lt.s32.totalorder %s69, 0
      %s71 = scalar_select %p70, %s69, 0
      %s72 = smul.u32 2, %s71
      %s74 = ssub.s32 256, 256
      %75 = vsyncadd [#allocation9], %s74
      %s76 = smul.addr %s72, 128
      %s77 = scalar_lea.hbm %s3, %s76
      %s78 = sshll.u32 [#allocation8], 4
      %s79 = int_to_ptr.vmem [resolvable:$true] %s78
      %84 = dma.hbm_to_vmem [thread:$0]  %s77, 256, %s79, [#allocation9], 128, 128, 8
    $region17: #{tpu_custom_call.1} parent=1 // pred_fallthru
      _
    // Predicated region
    $region18: #{tpu_custom_call.1} parent=1 // pred_check
      _
    $region19: #{tpu_custom_call.1} parent=1 // pred_check_branch
      %86 = sbr.rel (0) target = $region21
    $region20: #{tpu_custom_call.1} parent=1 // pred_region
      %87 = dma.done [#allocation3], 256
    $region21: #{tpu_custom_call.1} parent=1 // pred_fallthru
      _
    // Predicated region
    $region22: #{tpu_custom_call.1} parent=1 // pred_check
      _
    $region23: #{tpu_custom_call.1} parent=1 // pred_check_branch
      %89 = sbr.rel (0) target = $region25
    $region24: #{tpu_custom_call.1} parent=1 // pred_region
      %90 = dma.done [#allocation6], 256
    $region25: #{tpu_custom_call.1} parent=1 // pred_fallthru
      _
    // Predicated region
    $region26: #{tpu_custom_call.1} parent=1 // pred_check
      _
    $region27: #{tpu_custom_call.1} parent=1 // pred_check_branch
      %92 = sbr.rel (0) target = $region29
    $region28: #{tpu_custom_call.1} parent=1 // pred_region
      %93 = dma.done [#allocation6], 256
    $region29: #{tpu_custom_call.1} parent=1 // pred_fallthru
      _
    // Predicated region
    $region30: #{tpu_custom_call.1} parent=1 // pred_check
      _
    $region31: #{tpu_custom_call.1} parent=1 // pred_check_branch
      %95 = sbr.rel (0) target = $region33
    $region32: #{tpu_custom_call.1} parent=1 // pred_region
      %96 = dma.done [#allocation9], 256
    $region33: #{tpu_custom_call.1} parent=1 // pred_fallthru
      _
    %s97 = sadd.s32 0, 0
    %p98 = scmp.lt.s32.totalorder %s97, 0
    %s99 = scalar_select %p98, %s97, 0
    %s100 = smul.u32 2, %s99
    %s101 = sadd.s32 0, 0
    %p102 = scmp.lt.s32.totalorder %s101, 0
    %s103 = scalar_select %p102, %s101, 0
    %s104 = smul.u32 2, %s103
    %s105 = sadd.s32 0, 0
    %p106 = scmp.lt.s32.totalorder %s105, 0
    %s107 = scalar_select %p106, %s105, 0
    %s108 = smul.u32 2, %s107
    %s109 = sadd.s32 0, 0
    %p110 = scmp.lt.s32.totalorder %s109, 0
    %s111 = scalar_select %p110, %s109, 0
    %s112 = smul.u32 2, %s111
    %p113 = scmp.eq.s32.totalorder 0, 0
    // Predicated region
    $region34: #{tpu_custom_call.1} parent=1 // pred_check
      %p114 = pneg %p113
    $region35: #{tpu_custom_call.1} parent=1 // pred_check_branch
      %116 = sbr.rel (%p114) target = $region37
    $region36: #{tpu_custom_call.1} parent=1 // pred_region
      %117 = vst [vmem:[#allocation10] sm:$0xff] 0.0
      %118 = vst [vmem:[#allocation10 + $0x8] sm:$0xff] 0.0
      %119 = vst [vmem:[#allocation10 + $0x10] sm:$0xff] 0.0
      %120 = vst [vmem:[#allocation10 + $0x18] sm:$0xff] 0.0
      %121 = vst [vmem:[#allocation10 + $0x20] sm:$0xff] 0.0
      %122 = vst [vmem:[#allocation10 + $0x28] sm:$0xff] 0.0
      %123 = vst [vmem:[#allocation10 + $0x30] sm:$0xff] 0.0
      %124 = vst [vmem:[#allocation10 + $0x38] sm:$0xff] 0.0
      %125 = vst [vmem:[#allocation10 + $0x40] sm:$0xff] 0.0
      %126 = vst [vmem:[#allocation10 + $0x48] sm:$0xff] 0.0
      %127 = vst [vmem:[#allocation10 + $0x50] sm:$0xff] 0.0
      %128 = vst [vmem:[#allocation10 + $0x58] sm:$0xff] 0.0
    $region37: #{tpu_custom_call.1} parent=1 // pred_fallthru
      _
    %v129 = vld [vmem:[#allocation8] sm:$0xff]
    %v130 = vld [vmem:[#allocation8 + $0x8] sm:$0xff]
    %vm131 = vcmp.gt.f32.partialorder %v129, 0.5
    %vm132 = vcmp.gt.f32.partialorder %v130, 0.5
    %v133 = vld [vmem:[#allocation2] sm:$0xff]
    %v134 = vld [vmem:[#allocation2 + $0x8] sm:$0xff]
    %v135 = vsub.f32 1.0, %v133
    %v136 = vsub.f32 1.0, %v134
    %v137 = vsel %vm131, %v133, %v135
    %v138 = vsel %vm132, %v134, %v136
    %v139 = vlog2.pop %v137
    %v140 = vmul.f32 %v139, 0.6931472
    %v141 = vlog2.pop %v138
    %v142 = vmul.f32 %v141, 0.6931472
    %v143 = vmax.f32 %v140, -100.0
    %v144 = vmax.f32 %v142, -100.0
    %v145 = vld [vmem:[#allocation10] sm:$0xff]
    %v146 = vadd.f32 %v143, %v144
    %v147 = vadd.f32 %v145, %v146
    %148 = vst [vmem:[#allocation10] sm:$0xff] %v147
    %v149 = vsel %vm131, %v133, 0.0
    %v150 = vsel %vm132, %v134, 0.0
    %s151 = scalar_lea.vmem [#allocation10], 8
    %v152 = vld [vmem:[%s151] sm:$0xff]
    %v153 = vadd.f32 %v149, %v150
    %v154 = vadd.f32 %v152, %v153
    %155 = vst [vmem:[%s151] sm:$0xff] %v154
    %s156 = scalar_lea.vmem [#allocation10], 16
    %v157 = vld [vmem:[%s156] sm:$0xff]
    %v158 = vadd.f32 %v133, %v134
    %v159 = vadd.f32 %v157, %v158
    %160 = vst [vmem:[%s156] sm:$0xff] %v159
    %v161 = vsel %vm131, 1.0, 0.0
    %v162 = vsel %vm132, 1.0, 0.0
    %s163 = scalar_lea.vmem [#allocation10], 24
    %v164 = vld [vmem:[%s163] sm:$0xff]
    %v165 = vadd.f32 %v161, %v162
    %v166 = vadd.f32 %v164, %v165
    %167 = vst [vmem:[%s163] sm:$0xff] %v166
    %v168 = vld [vmem:[#allocation5] sm:$0xff]
    %v169 = vld [vmem:[#allocation5 + $0x8] sm:$0xff]
    %v170 = vsub.f32 1.0, %v168
    %v171 = vsub.f32 1.0, %v169
    %v172 = vsel %vm131, %v168, %v170
    %v173 = vsel %vm132, %v169, %v171
    %v174 = vlog2.pop %v172
    %v175 = vmul.f32 %v174, 0.6931472
    %v176 = vlog2.pop %v173
    %v177 = vmul.f32 %v176, 0.6931472
    %v178 = vmax.f32 %v175, -100.0
    %v179 = vmax.f32 %v177, -100.0
    %s180 = scalar_lea.vmem [#allocation10], 32
    %v181 = vld [vmem:[%s180] sm:$0xff]
    %v182 = vadd.f32 %v178, %v179
    %v183 = vadd.f32 %v181, %v182
    %184 = vst [vmem:[%s180] sm:$0xff] %v183
    %v185 = vsel %vm131, %v168, 0.0
    %v186 = vsel %vm132, %v169, 0.0
    %s187 = scalar_lea.vmem [#allocation10], 40
    %v188 = vld [vmem:[%s187] sm:$0xff]
    %v189 = vadd.f32 %v185, %v186
    %v190 = vadd.f32 %v188, %v189
    %191 = vst [vmem:[%s187] sm:$0xff] %v190
    %s192 = scalar_lea.vmem [#allocation10], 48
    %v193 = vld [vmem:[%s192] sm:$0xff]
    %v194 = vadd.f32 %v168, %v169
    %v195 = vadd.f32 %v193, %v194
    %196 = vst [vmem:[%s192] sm:$0xff] %v195
    %v197 = vld [vmem:[#allocation7] sm:$0xff]
    %v198 = vld [vmem:[#allocation7 + $0x8] sm:$0xff]
    %v199 = vsub.f32 1.0, %v197
    %v200 = vsub.f32 1.0, %v198
    %v201 = vsel %vm131, %v197, %v199
    %v202 = vsel %vm132, %v198, %v200
    %v203 = vlog2.pop %v201
    %v204 = vmul.f32 %v203, 0.6931472
    %v205 = vlog2.pop %v202
    %v206 = vmul.f32 %v205, 0.6931472
    %v207 = vmax.f32 %v204, -100.0
    %v208 = vmax.f32 %v206, -100.0
    %s209 = scalar_lea.vmem [#allocation10], 64
    %v210 = vld [vmem:[%s209] sm:$0xff]
    %v211 = vadd.f32 %v207, %v208
    %v212 = vadd.f32 %v210, %v211
    %213 = vst [vmem:[%s209] sm:$0xff] %v212
    %v214 = vsel %vm131, %v197, 0.0
    %v215 = vsel %vm132, %v198, 0.0
    %s216 = scalar_lea.vmem [#allocation10], 72
    %v217 = vld [vmem:[%s216] sm:$0xff]
    %v218 = vadd.f32 %v214, %v215
    %v219 = vadd.f32 %v217, %v218
    %220 = vst [vmem:[%s216] sm:$0xff] %v219
    %s221 = scalar_lea.vmem [#allocation10], 80
    %v222 = vld [vmem:[%s221] sm:$0xff]
    %v223 = vadd.f32 %v197, %v198
    %v224 = vadd.f32 %v222, %v223
    %225 = vst [vmem:[%s221] sm:$0xff] %v224
    // Predicated region
    $region38: #{tpu_custom_call.1} parent=1 // pred_check
      _
    $region39: #{tpu_custom_call.1} parent=1 // pred_check_branch
      %227 = sbr.rel (0) target = $region41
    $region40: #{tpu_custom_call.1} parent=1 // pred_region
      %s229 = ssub.s32 1536, 1536
      %230 = vsyncadd [#allocation4], %s229
      %s231 = sshll.u32 [#allocation10], 4
      %s232 = int_to_ptr.vmem [resolvable:$true] %s231
      %237 = dma.vmem_to_hbm [thread:$0]  %s232, 1536, %s4, [#allocation4], 128, 128, 8
    $region41: #{tpu_custom_call.1} parent=1 // pred_fallthru
      _
    // Predicated region
    $region42: #{tpu_custom_call.1} parent=1 // pred_check
      _
    $region43: #{tpu_custom_call.1} parent=1 // pred_check_branch
      %239 = sbr.rel (0) target = $region45
    $region44: #{tpu_custom_call.1} parent=1 // pred_region
      %240 = dma.done [#allocation4], 1536
    $region45: #{tpu_custom_call.1} parent=1 // pred_fallthru
      _
    %241 = vsyncpa [#allocation3], 1
    %242 = vsyncpa [#allocation6], 1
    %243 = vsyncpa [#allocation9], 1
    %244 = vsyncpa [#allocation4], 1

</llo_original>
